<compile_context>
chip_gen: v6e
topology: v6e:2x2x1
jax: 0.10.0
libtpu: 0.0.40
codegen_flags: <defaults>
</compile_context>

<pallas_src>
import functools

import jax
import jax.numpy as jnp
from jax.experimental import pallas as pl
from jax.experimental.pallas import tpu as pltpu


def _round_up(x, m):
  return ((x + m - 1) // m) * m


# ----------------------------- parameter packing -----------------------------
def init_params(key, input_encoding_size, rnn_size, att_hid_size):
  """Deterministic synthetic parameters (shapes follow the PyTorch __init__)."""
  E, H, A = input_encoding_size, rnn_size, att_hid_size
  ks = jax.random.split(key, 10)
  s = 0.1
  p = {
      # att_lstm: LSTMCell(E + 2H -> H): (W_ih^T, W_hh^T, b_ih + b_hh)
      "att_w_ih": s * jax.random.normal(ks[0], (2 * H + E, 4 * H), jnp.float32),
      "att_w_hh": s * jax.random.normal(ks[1], (H, 4 * H), jnp.float32),
      "att_b":    s * jax.random.normal(ks[2], (1, 4 * H), jnp.float32),
      # soft_attn: h2attn Linear(H -> A), alpha_net Linear(A -> 1)
      "h2a_w":    s * jax.random.normal(ks[3], (H, A), jnp.float32),
      "h2a_b":    s * jax.random.normal(ks[4], (1, A), jnp.float32),
      "alpha_w":  s * jax.random.normal(ks[5], (1, A), jnp.float32),
      "alpha_b":  s * jax.random.normal(ks[6], (1, 1), jnp.float32),
      # lang_lstm: LSTMCell(2H -> H)
      "lang_w_ih": s * jax.random.normal(ks[7], (2 * H, 4 * H), jnp.float32),
      "lang_w_hh": s * jax.random.normal(ks[8], (H, 4 * H), jnp.float32),
      "lang_b":    s * jax.random.normal(ks[9], (1, 4 * H), jnp.float32),
  }
  # i2h_2 / h2h_2 / localied_fc are declared in __init__ but unused in forward();
  # alpha_b is a constant additive shift before a softmax -> mathematically dead.
  return p


def prepare_decoder_params(params, softmax_temp=1.0):
  """Pack ALL decoder parameters into one VMEM-friendly (7H+E+4, 4H) slab.

  Done ONCE at parameter-preparation time (hoisted out of the per-step call,
  per the perf review).  Row layout:
    [0        : 3H+E)   w_att   rows [h_lang_prev | fc | emb | h_attn_prev]
    [3H+E     : 6H+E)   w_lang  rows [weighted_feat | h_attn | h_lang_prev]
    [6H+E     : 7H+E)   h2attn weight, lane-padded A -> 4H
    [7H+E     : +4)     att_b, lang_b, h2attn bias (padded), alpha_w/temp (padded)
  """
  H = params["att_w_hh"].shape[0]
  A = params["h2a_w"].shape[1]
  W = 4 * H
  assert A <= W, "packing assumes att_hid_size <= 4 * rnn_size"

  def pad_lanes(x):
    return jnp.pad(x, ((0, 0), (0, W - x.shape[1])))

  w_att = jnp.concatenate([params["att_w_ih"], params["att_w_hh"]], axis=0)
  w_lang = jnp.concatenate([params["lang_w_ih"], params["lang_w_hh"]], axis=0)
  h2a_w = pad_lanes(params["h2a_w"])
  tail = jnp.concatenate(
      [params["att_b"],
       params["lang_b"],
       pad_lanes(params["h2a_b"]),
       pad_lanes(params["alpha_w"] * (1.0 / softmax_temp))], axis=0)
  slab = jnp.concatenate([w_att, w_lang, h2a_w, tail], axis=0).astype(jnp.float32)
  return slab


# ------------------------------- kernel bodies -------------------------------
def _load_params(param_ref, *, H, E, A):
  n_att = 3 * H + E
  r1 = n_att
  r2 = r1 + 3 * H
  r3 = r2 + H
  w_att = param_ref[0:r1, :]           # (3H+E, 4H)
  w_lang = param_ref[r1:r2, :]         # (3H, 4H)
  h2a_w = param_ref[r2:r3, :]          # (H, 4H), cols >= A are zero
  tail = param_ref[r3:r3 + 4, :]       # (4, 4H)
  att_b = tail[0:1, :]
  lang_b = tail[1:2, :]
  h2a_b = tail[2:3, :]                 # zero-padded past A
  alpha_w = tail[3:4, :A]              # (1, A), pre-scaled by 1/softmax_temp
  return w_att, w_lang, h2a_w, att_b, lang_b, h2a_b, alpha_w


def _core_compute(x_att, h_lang_prev, c_attn_prev, c_lang_prev,
                  ctx_all, pfeat_all, mask_bias, params, *, H, A, Np):
  """One decoder-core step on already-loaded values; returns new state + attn."""
  w_att, w_lang, h2a_w, att_b, lang_b, h2a_b, alpha_w = params

  # ---- attention LSTM: one fused (B, 3H+E) x (3H+E, 4H) MXU contraction ----
  g1 = jnp.dot(x_att, w_att, preferred_element_type=jnp.float32) + att_b
  i1 = jax.nn.sigmoid(g1[:, 0 * H:1 * H])
  f1 = jax.nn.sigmoid(g1[:, 1 * H:2 * H])
  n1 = jnp.tanh(g1[:, 2 * H:3 * H])
  o1 = jax.nn.sigmoid(g1[:, 3 * H:4 * H])
  c_attn = f1 * c_attn_prev + i1 * n1
  h_attn = o1 * jnp.tanh(c_attn)

  # ---- shared additive attention, ONE pass over fused [pool | conv] regions --
  att_h = (jnp.dot(h_attn, h2a_w, preferred_element_type=jnp.float32)
           + h2a_b)[:, :A]                                      # (B, A)
  dot_t = jnp.tanh(pfeat_all + att_h[:, None, :])               # (B, N, A)
  scores = jnp.sum(dot_t * alpha_w[None, :, :], axis=-1) + mask_bias  # (B, N)

  def _softmax(s):
    e = jnp.exp(s - jnp.max(s, axis=-1, keepdims=True))
    # divide -> EUP reciprocal (free slot); error well within check tolerance
    return e * pl.reciprocal(jnp.sum(e, axis=-1, keepdims=True), approx=True)

  w_pool = _softmax(scores[:, :Np])                             # (B, Np)
  w_conv = _softmax(scores[:, Np:])                             # (B, Nc)
  w_all = jnp.concatenate([w_pool, w_conv], axis=1)             # (B, N)
  # combined reduction directly yields weighted_pool + attn_conv (lang input);
  # weighted_pool is also an output on its own.
  wsum_all = jnp.sum(w_all[:, :, None] * ctx_all, axis=1)             # (B, H)
  weighted_pool = jnp.sum(w_pool[:, :, None] * ctx_all[:, :Np, :], axis=1)

  # ---- language LSTM: in-register (B, 3H) concat + one fused contraction ----
  x_lang = jnp.concatenate([wsum_all, h_attn, h_lang_prev], axis=1)
  g2 = jnp.dot(x_lang, w_lang, preferred_element_type=jnp.float32) + lang_b
  i2 = jax.nn.sigmoid(g2[:, 0 * H:1 * H])
  f2 = jax.nn.sigmoid(g2[:, 1 * H:2 * H])
  n2 = jnp.tanh(g2[:, 2 * H:3 * H])
  o2 = jax.nn.sigmoid(g2[:, 3 * H:4 * H])
  c_lang = f2 * c_lang_prev + i2 * n2
  h_lang = o2 * jnp.tanh(c_lang)
  return h_attn, h_lang, c_attn, c_lang, weighted_pool, w_pool


def _pack_out(h_attn, h_lang, c_attn, c_lang, wpool, w_pool, out_width, H, Np):
  pieces = [h_attn, h_lang, c_attn, c_lang, wpool, w_pool]
  pad_w = out_width - (5 * H + Np)
  if pad_w:
    pieces.append(jnp.zeros((h_attn.shape[0], pad_w), jnp.float32))
  return jnp.concatenate(pieces, axis=1)   # one lane-dense full-vreg row


def _decoder_step_kernel(act_ref, ctx_ref, pfeat_ref, param_ref, out_ref,
                         *, H, E, A, Np):
  """Single decoder step.  act layout:
     [h_lang_prev | fc | emb | h_attn_prev | c_attn_prev | c_lang_prev | mask_bias]."""
  act = act_ref[...]
  n_att = 3 * H + E
  x_att = act[:, :n_att]
  h_lang_prev = act[:, :H]
  c_attn_prev = act[:, n_att:n_att + H]
  c_lang_prev = act[:, n_att + H:n_att + 2 * H]
  mask_bias = act[:, n_att + 2 * H:]

  params = _load_params(param_ref, H=H, E=E, A=A)
  h_attn, h_lang, c_attn, c_lang, wpool, w_pool = _core_compute(
      x_att, h_lang_prev, c_attn_prev, c_lang_prev,
      ctx_ref[...], pfeat_ref[...], mask_bias, params, H=H, A=A, Np=Np)
  out_ref[...] = _pack_out(h_attn, h_lang, c_attn, c_lang, wpool, w_pool,
                           out_ref.shape[-1], H, Np)


def _decoder_seq_kernel(emb_ref, static_ref, ctx_ref, pfeat_ref, param_ref,
                        out_ref, state_scr, *, H, E, A, Np):
  """T gridded decoder steps.  static layout:
     [fc | h_attn0 | h_lang0 | c_attn0 | c_lang0 | mask_bias]."""
  t = pl.program_id(0)

  @pl.when(t == 0)
  def _():
    state_scr[...] = static_ref[:, H:5 * H]   # [h_attn | h_lang | c_attn | c_lang]

  static = static_ref[...]
  fc = static[:, :H]
  mask_bias = static[:, 5 * H:]
  st = state_scr[...]
  h_attn_prev = st[:, 0 * H:1 * H]
  h_lang_prev = st[:, 1 * H:2 * H]
  c_attn_prev = st[:, 2 * H:3 * H]
  c_lang_prev = st[:, 3 * H:4 * H]

  emb = emb_ref[0]                                             # (B, E)
  x_att = jnp.concatenate([h_lang_prev, fc, emb, h_attn_prev], axis=1)

  params = _load_params(param_ref, H=H, E=E, A=A)
  h_attn, h_lang, c_attn, c_lang, wpool, w_pool = _core_compute(
      x_att, h_lang_prev, c_attn_prev, c_lang_prev,
      ctx_ref[...], pfeat_ref[...], mask_bias, params, H=H, A=A, Np=Np)

  state_scr[...] = jnp.concatenate([h_attn, h_lang, c_attn, c_lang], axis=1)
  out_ref[0] = _pack_out(h_attn, h_lang, c_attn, c_lang, wpool, w_pool,
                         out_ref.shape[-1], H, Np)


# ---------------------------------- wrappers ----------------------------------
def _cost_estimate(operands, out_elems, *, B, H, E, A, N, steps):
  flops = steps * (
      2 * B * (3 * H + E) * 4 * H      # fused attention-LSTM gate matmul
      + 2 * B * (3 * H) * 4 * H        # fused language-LSTM gate matmul
      + 2 * B * H * 4 * H              # h2attn projection (lane-padded)
      + 6 * B * N * A                  # additive-attention elementwise + score
      + 4 * B * N * H)                 # attention-weighted context sums
  transcendentals = steps * (10 * B * H + B * N * A + B * N)
  bytes_accessed = (sum(int(x.size) * x.dtype.itemsize for x in operands)
                    + int(out_elems) * 4)
  return pl.CostEstimate(flops=flops, transcendentals=transcendentals,
                         bytes_accessed=bytes_accessed)


def _mask_bias(pnt_mask, B, Nc):
  return jnp.concatenate(
      [pnt_mask.astype(jnp.float32) * jnp.float32(-1e30),
       jnp.zeros((B, Nc), jnp.float32)], axis=1)


def top_down_decoder_core(param_slab, embedded_word, fc_feats, conv_feats,
                          p_conv_feats, pool_feats, p_pool_feats, pnt_mask,
                          state):
  """One decoder step (matches TopDownDecoderCore.forward, eval mode)."""
  state_h, state_c = state
  B, E = embedded_word.shape
  H = pool_feats.shape[2]
  A = p_pool_feats.shape[2]
  Np = pool_feats.shape[1]
  Nc = conv_feats.shape[1]
  N = Np + Nc
  assert param_slab.shape[1] == 4 * H
  out_w = _round_up(5 * H + Np, 128)

  # one lane-packed activation slab (1 DMA descriptor for all per-step values)
  act = jnp.concatenate(
      [state_h[1], fc_feats, embedded_word, state_h[0],
       state_c[0], state_c[1], _mask_bias(pnt_mask, B, Nc)],
      axis=1).astype(jnp.float32)
  ctx_all = jnp.concatenate([pool_feats, conv_feats], axis=1).astype(jnp.float32)
  pfeat_all = jnp.concatenate([p_conv_feats * 0 + p_pool_feats, p_conv_feats],
                              axis=1) if False else jnp.concatenate(
      [p_pool_feats, p_conv_feats], axis=1).astype(jnp.float32)

  kernel = functools.partial(_decoder_step_kernel, H=H, E=E, A=A, Np=Np)
  vmem = pl.BlockSpec(memory_space=pltpu.MemorySpace.VMEM)
  operands = (act, ctx_all, pfeat_all, param_slab)

  out = pl.pallas_call(
      kernel,
      out_shape=jax.ShapeDtypeStruct((B, out_w), jnp.float32),
      in_specs=[vmem] * len(operands),
      out_specs=vmem,
      cost_estimate=_cost_estimate(operands, B * out_w,
                                   B=B, H=H, E=E, A=A, N=N, steps=1),
  )(*operands)

  h_attn = out[:, 0 * H:1 * H]
  h_lang = out[:, 1 * H:2 * H]
  c_attn = out[:, 2 * H:3 * H]
  c_lang = out[:, 3 * H:4 * H]
  weighted_pool = out[:, 4 * H:5 * H]
  roi_attn = out[:, 5 * H:5 * H + Np]

  new_state = (jnp.stack([h_attn, h_lang]), jnp.stack([c_attn, c_lang]))
  output = h_lang                      # dropout is identity in eval mode
  # TODO(synk): proposal_frame_mask / with_sentinel path (frame_masked_attn)
  # only exists when a proposal_frame_mask is provided; None with defaults.
  frame_masked_attn = None
  return output, new_state, roi_attn, frame_masked_attn, weighted_pool


def top_down_decoder_core_sequence(param_slab, embedded_words, fc_feats,
                                   conv_feats, p_conv_feats, pool_feats,
                                   p_pool_feats, pnt_mask, state):
  """T decoder steps fused into ONE gridded pallas_call (teacher-forced /
  precomputed embeddings).  Weights + features stay VMEM-resident via constant
  index_maps; h/c carried in VMEM scratch; per-step outputs streamed out."""
  state_h, state_c = state
  T, B, E = embedded_words.shape
  H = pool_feats.shape[2]
  A = p_pool_feats.shape[2]
  Np = pool_feats.shape[1]
  Nc = conv_feats.shape[1]
  N = Np + Nc
  assert param_slab.shape[1] == 4 * H
  out_w = _round_up(5 * H + Np, 128)

  static = jnp.concatenate(
      [fc_feats, state_h[0], state_h[1], state_c[0], state_c[1],
       _mask_bias(pnt_mask, B, Nc)], axis=1).astype(jnp.float32)   # (B, 5H+N)
  ctx_all = jnp.concatenate([pool_feats, conv_feats], axis=1).astype(jnp.float32)
  pfeat_all = jnp.concatenate([p_pool_feats, p_conv_feats], axis=1).astype(jnp.float32)
  emb = embedded_words.astype(jnp.float32)

  kernel = functools.partial(_decoder_seq_kernel, H=H, E=E, A=A, Np=Np)
  operands = (emb, static, ctx_all, pfeat_all, param_slab)

  # TODO(synk): for beam/batch >= 8 add a leading "parallel" batch axis so
  # v7x's 2 TensorCores both get work; at B=2 it is not worthwhile.
  out_seq = pl.pallas_call(
      kernel,
      out_shape=jax.ShapeDtypeStruct((T, B, out_w), jnp.float32),
      grid=(T,),
      in_specs=[
          pl.BlockSpec((1, B, E), lambda t: (t, 0, 0)),       # streamed per step
          pl.BlockSpec((B, 5 * H + N), lambda t: (0, 0)),      # resident
          pl.BlockSpec((B, N, H), lambda t: (0, 0, 0)),        # resident
          pl.BlockSpec((B, N, A), lambda t: (0, 0, 0)),        # resident
          pl.BlockSpec(param_slab.shape, lambda t: (0, 0)),    # resident weights
      ],
      out_specs=pl.BlockSpec((1, B, out_w), lambda t: (t, 0, 0)),
      scratch_shapes=[pltpu.VMEM((B, 4 * H), jnp.float32)],    # h/c carry
      compiler_params=pltpu.CompilerParams(
          dimension_semantics=("arbitrary",)),
      cost_estimate=_cost_estimate(operands, T * B * out_w,
                                   B=B, H=H, E=E, A=A, N=N, steps=T),
  )(*operands)

  h_attn = out_seq[..., 0 * H:1 * H]
  h_lang = out_seq[..., 1 * H:2 * H]
  c_attn = out_seq[..., 2 * H:3 * H]
  c_lang = out_seq[..., 3 * H:4 * H]
  weighted_pool = out_seq[..., 4 * H:5 * H]
  roi_attn = out_seq[..., 5 * H:5 * H + Np]
  final_state = (jnp.stack([h_attn[-1], h_lang[-1]]),
                 jnp.stack([c_attn[-1], c_lang[-1]]))
  return h_lang, final_state, roi_attn, weighted_pool


# ------------------------- pure-JAX reference (sanity) -----------------------
def _reference(params, emb, fc, conv, pconv, pool, ppool, mask, state, temp=1.0):
  sh, sc = state
  prev_h = sh[1]

  def lstm(x, h, c, w_ih, w_hh, b):
    g = x @ w_ih + h @ w_hh + b
    i, f, gg, o = jnp.split(g, 4, axis=1)
    c2 = jax.nn.sigmoid(f) * c + jax.nn.sigmoid(i) * jnp.tanh(gg)
    return jax.nn.sigmoid(o) * jnp.tanh(c2), c2

  x1 = jnp.concatenate([prev_h, fc, emb], axis=1)
  h_attn, c_attn = lstm(x1, sh[0], sc[0], params["att_w_ih"],
                        params["att_w_hh"], params["att_b"])

  att_h = h_attn @ params["h2a_w"] + params["h2a_b"]

  def attend(p, ctx, m):
    d = jnp.tanh(p + att_h[:, None, :])
    s = jnp.sum(d * params["alpha_w"][None, :, :], axis=-1) + params["alpha_b"][0, 0]
    s = s / temp
    if m is not None:
      s = jnp.where(m > 0.5, -1e30, s)
    w = jax.nn.softmax(s, axis=-1)
    return jnp.einsum("bn,bnh->bh", w, ctx), w

  wpool, roi = attend(ppool, pool, mask)
  aconv, _ = attend(pconv, conv, None)
  x2 = jnp.concatenate([wpool + aconv, h_attn], axis=1)
  h_lang, c_lang = lstm(x2, sh[1], sc[1], params["lang_w_ih"],
                        params["lang_w_hh"], params["lang_b"])
  return h_lang, jnp.stack([h_attn, h_lang]), jnp.stack([c_attn, c_lang]), roi, wpool


if __name__ == "__main__":
  # opts: input_encoding_size=32, rnn_size=32, att_hid_size=32, softmax_temp=1.0,
  #       drop_prob_lm (eval -> identity), 8 ROIs / 8 conv regions, 4 decode steps.
  B, E, H, A, Np, Nc, T = 2, 32, 32, 32, 8, 8, 4

  key = jax.random.PRNGKey(0)
  kp, *kx = jax.random.split(key, 12)
  params = init_params(kp, E, H, A)
  param_slab = prepare_decoder_params(params, softmax_temp=1.0)   # hoisted: once

  embedded_word = jax.random.normal(kx[0], (B, E), jnp.float32)
  fc_feats      = jax.random.normal(kx[1], (B, H), jnp.float32)
  conv_feats    = jax.random.normal(kx[2], (B, Nc, H), jnp.float32)
  p_conv_feats  = jax.random.normal(kx[3], (B, Nc, A), jnp.float32)
  pool_feats    = jax.random.normal(kx[4], (B, Np, H), jnp.float32)
  p_pool_feats  = jax.random.normal(kx[5], (B, Np, A), jnp.float32)
  pnt_mask = jnp.zeros((B, Np), jnp.float32).at[1, 6:].set(1.0)  # 1 == masked out
  state_h = 0.1 * jax.random.normal(kx[6], (2, B, H), jnp.float32)
  state_c = 0.1 * jax.random.normal(kx[7], (2, B, H), jnp.float32)
  state = (state_h, state_c)
  emb_seq = jax.random.normal(kx[8], (T, B, E), jnp.float32)

  tol = dict(rtol=3e-3, atol=3e-3)   # approx EUP reciprocal in the softmax

  # ---------------- single decoder step (module forward) ----------------
  step_fn = jax.jit(top_down_decoder_core)
  output, new_state, roi_attn, frame_masked_attn, weighted_pool = step_fn(
      param_slab, embedded_word, fc_feats, conv_feats, p_conv_feats,
      pool_feats, p_pool_feats, pnt_mask, state)
  jax.block_until_ready((output, new_state, roi_attn, weighted_pool))

  r_out, r_h, r_c, r_roi, r_wpool = _reference(
      params, embedded_word, fc_feats, conv_feats, p_conv_feats,
      pool_feats, p_pool_feats, pnt_mask, state)
  assert jnp.allclose(output, r_out, **tol)
  assert jnp.allclose(new_state[0], r_h, **tol)
  assert jnp.allclose(new_state[1], r_c, **tol)
  assert jnp.allclose(roi_attn, r_roi, **tol)
  assert jnp.allclose(weighted_pool, r_wpool, **tol)

  # --------- T steps fused into one gridded pallas_call (perf item #1) ---------
  seq_fn = jax.jit(top_down_decoder_core_sequence)
  h_seq, final_state, roi_seq, wpool_seq = seq_fn(
      param_slab, emb_seq, fc_feats, conv_feats, p_conv_feats,
      pool_feats, p_pool_feats, pnt_mask, state)
  jax.block_until_ready((h_seq, final_state, roi_seq, wpool_seq))

  st = state
  for t in range(T):
    r_out, r_h, r_c, r_roi, r_wpool = _reference(
        params, emb_seq[t], fc_feats, conv_feats, p_conv_feats,
        pool_feats, p_pool_feats, pnt_mask, st)
    st = (r_h, r_c)
    assert jnp.allclose(h_seq[t], r_out, **tol)
    assert jnp.allclose(roi_seq[t], r_roi, **tol)
    assert jnp.allclose(wpool_seq[t], r_wpool, **tol)
  assert jnp.allclose(final_state[0], st[0], **tol)
  assert jnp.allclose(final_state[1], st[1], **tol)

  print("KERNEL_OK")
</pallas_src>

<mosaic_0001>
module attributes {stable_mosaic.version = 11 : i64} {
  func.func @_decoder_step_kernel(%arg0: memref<2x208xf32, #tpu.memory_space<vmem>>, %arg1: memref<2x16x32xf32, #tpu.memory_space<vmem>>, %arg2: memref<2x16x32xf32, #tpu.memory_space<vmem>>, %arg3: memref<260x128xf32, #tpu.memory_space<vmem>>, %arg4: memref<2x256xf32, #tpu.memory_space<vmem>>) attributes {dimension_semantics = [], scalar_prefetch = 0 : i64, scratch_operands = 0 : i64, tpu.core_type = #tpu.core_type<tc>} {
    %c0 = arith.constant 0 : index
    %c0_0 = arith.constant 0 : index
    %0 = vector.load %arg0[%c0, %c0_0] : memref<2x208xf32, #tpu.memory_space<vmem>>, vector<2x208xf32>
    %1 = vector.extract_strided_slice %0 {offsets = [0, 0], sizes = [2, 128], strides = [1, 1]} : vector<2x208xf32> to vector<2x128xf32>
    %2 = vector.extract_strided_slice %0 {offsets = [0, 0], sizes = [2, 32], strides = [1, 1]} : vector<2x208xf32> to vector<2x32xf32>
    %3 = vector.extract_strided_slice %0 {offsets = [0, 128], sizes = [2, 32], strides = [1, 1]} : vector<2x208xf32> to vector<2x32xf32>
    %4 = vector.extract_strided_slice %0 {offsets = [0, 160], sizes = [2, 32], strides = [1, 1]} : vector<2x208xf32> to vector<2x32xf32>
    %5 = vector.extract_strided_slice %0 {offsets = [0, 192], sizes = [2, 16], strides = [1, 1]} : vector<2x208xf32> to vector<2x16xf32>
    %c0_1 = arith.constant 0 : index
    %c0_2 = arith.constant 0 : index
    %6 = vector.load %arg3[%c0_1, %c0_2] : memref<260x128xf32, #tpu.memory_space<vmem>>, vector<128x128xf32>
    %c128 = arith.constant 128 : index
    %c0_3 = arith.constant 0 : index
    %7 = vector.load %arg3[%c128, %c0_3] : memref<260x128xf32, #tpu.memory_space<vmem>>, vector<96x128xf32>
    %c224 = arith.constant 224 : index
    %c0_4 = arith.constant 0 : index
    %8 = vector.load %arg3[%c224, %c0_4] : memref<260x128xf32, #tpu.memory_space<vmem>>, vector<32x128xf32>
    %c256 = arith.constant 256 : index
    %c0_5 = arith.constant 0 : index
    %9 = vector.load %arg3[%c256, %c0_5] : memref<260x128xf32, #tpu.memory_space<vmem>>, vector<4x128xf32>
    %10 = vector.extract_strided_slice %9 {offsets = [0, 0], sizes = [1, 128], strides = [1, 1]} : vector<4x128xf32> to vector<1x128xf32>
    %11 = vector.extract_strided_slice %9 {offsets = [1, 0], sizes = [1, 128], strides = [1, 1]} : vector<4x128xf32> to vector<1x128xf32>
    %12 = vector.extract_strided_slice %9 {offsets = [2, 0], sizes = [1, 128], strides = [1, 1]} : vector<4x128xf32> to vector<1x128xf32>
    %13 = vector.extract_strided_slice %9 {offsets = [3, 0], sizes = [1, 32], strides = [1, 1]} : vector<4x128xf32> to vector<1x32xf32>
    %c0_6 = arith.constant 0 : index
    %c0_7 = arith.constant 0 : index
    %c0_8 = arith.constant 0 : index
    %14 = vector.load %arg1[%c0_6, %c0_7, %c0_8] : memref<2x16x32xf32, #tpu.memory_space<vmem>>, vector<2x16x32xf32>
    %c0_9 = arith.constant 0 : index
    %c0_10 = arith.constant 0 : index
    %c0_11 = arith.constant 0 : index
    %15 = vector.load %arg2[%c0_9, %c0_10, %c0_11] : memref<2x16x32xf32, #tpu.memory_space<vmem>>, vector<2x16x32xf32>
    %cst = arith.constant dense<0.000000e+00> : vector<2x128xf32>
    %16 = tpu.matmul %1, %6, %cst {dimension_numbers = #tpu.dot_dimension_numbers<[1], [0], [0], [1], [0, 0, 1, 1], [], []>} : vector<2x128xf32>, vector<128x128xf32>, vector<2x128xf32> -> vector<2x128xf32>
    %17 = vector.broadcast %10 : vector<1x128xf32> to vector<2x128xf32>
    %18 = arith.addf %16, %17 : vector<2x128xf32>
    %19 = vector.extract_strided_slice %18 {offsets = [0, 0], sizes = [2, 32], strides = [1, 1]} : vector<2x128xf32> to vector<2x32xf32>
    %20 = arith.negf %19 : vector<2x32xf32>
    %21 = math.exp %20 : vector<2x32xf32>
    %cst_12 = arith.constant 1.000000e+00 : f32
    %22 = vector.broadcast %cst_12 : f32 to vector<2x32xf32>
    %23 = arith.addf %22, %21 : vector<2x32xf32>
    %24 = arith.divf %22, %23 : vector<2x32xf32>
    %25 = vector.extract_strided_slice %18 {offsets = [0, 32], sizes = [2, 32], strides = [1, 1]} : vector<2x128xf32> to vector<2x32xf32>
    %26 = arith.negf %25 : vector<2x32xf32>
    %27 = math.exp %26 : vector<2x32xf32>
    %cst_13 = arith.constant 1.000000e+00 : f32
    %28 = vector.broadcast %cst_13 : f32 to vector<2x32xf32>
    %29 = arith.addf %28, %27 : vector<2x32xf32>
    %30 = arith.divf %28, %29 : vector<2x32xf32>
    %31 = vector.extract_strided_slice %18 {offsets = [0, 64], sizes = [2, 32], strides = [1, 1]} : vector<2x128xf32> to vector<2x32xf32>
    %32 = math.tanh %31 : vector<2x32xf32>
    %33 = vector.extract_strided_slice %18 {offsets = [0, 96], sizes = [2, 32], strides = [1, 1]} : vector<2x128xf32> to vector<2x32xf32>
    %34 = arith.negf %33 : vector<2x32xf32>
    %35 = math.exp %34 : vector<2x32xf32>
    %cst_14 = arith.constant 1.000000e+00 : f32
    %36 = vector.broadcast %cst_14 : f32 to vector<2x32xf32>
    %37 = arith.addf %36, %35 : vector<2x32xf32>
    %38 = arith.divf %36, %37 : vector<2x32xf32>
    %39 = arith.mulf %30, %3 : vector<2x32xf32>
    %40 = arith.mulf %24, %32 : vector<2x32xf32>
    %41 = arith.addf %39, %40 : vector<2x32xf32>
    %42 = math.tanh %41 : vector<2x32xf32>
    %43 = arith.mulf %38, %42 : vector<2x32xf32>
    %cst_15 = arith.constant dense<0.000000e+00> : vector<2x128xf32>
    %44 = tpu.matmul %43, %8, %cst_15 {dimension_numbers = #tpu.dot_dimension_numbers<[1], [0], [0], [1], [0, 0, 1, 1], [], []>} : vector<2x32xf32>, vector<32x128xf32>, vector<2x128xf32> -> vector<2x128xf32>
    %45 = vector.broadcast %12 : vector<1x128xf32> to vector<2x128xf32>
    %46 = arith.addf %44, %45 : vector<2x128xf32>
    %47 = vector.extract_strided_slice %46 {offsets = [0, 0], sizes = [2, 32], strides = [1, 1]} : vector<2x128xf32> to vector<2x32xf32>
    %48 = vector.shape_cast %47 : vector<2x32xf32> to vector<2x1x32xf32>
    %49 = vector.broadcast %48 : vector<2x1x32xf32> to vector<2x16x32xf32>
    %50 = arith.addf %15, %49 : vector<2x16x32xf32>
    %51 = math.tanh %50 : vector<2x16x32xf32>
    %52 = vector.shape_cast %13 : vector<1x32xf32> to vector<1x1x32xf32>
    %53 = vector.broadcast %52 : vector<1x1x32xf32> to vector<2x16x32xf32>
    %54 = arith.mulf %51, %53 : vector<2x16x32xf32>
    %cst_16 = arith.constant dense<0.000000e+00> : vector<2x16xf32>
    %55 = vector.multi_reduction <add>, %54, %cst_16 [2] : vector<2x16x32xf32> to vector<2x16xf32>
    %56 = arith.addf %55, %5 : vector<2x16xf32>
    %57 = vector.extract_strided_slice %56 {offsets = [0, 0], sizes = [2, 8], strides = [1, 1]} : vector<2x16xf32> to vector<2x8xf32>
    %cst_17 = arith.constant dense<0xFF800000> : vector<2xf32>
    %58 = vector.multi_reduction <maximumf>, %57, %cst_17 [1] : vector<2x8xf32> to vector<2xf32>
    %59 = vector.shape_cast %58 : vector<2xf32> to vector<2x1xf32>
    %60 = vector.broadcast %59 : vector<2x1xf32> to vector<2x8xf32>
    %61 = arith.subf %57, %60 : vector<2x8xf32>
    %62 = math.exp %61 : vector<2x8xf32>
    %cst_18 = arith.constant dense<0.000000e+00> : vector<2xf32>
    %63 = vector.multi_reduction <add>, %62, %cst_18 [1] : vector<2x8xf32> to vector<2xf32>
    %64 = vector.shape_cast %63 : vector<2xf32> to vector<2x1xf32>
    %65 = tpu.reciprocal %64 {approx = true} : vector<2x1xf32> -> vector<2x1xf32>
    %66 = vector.broadcast %65 : vector<2x1xf32> to vector<2x8xf32>
    %67 = arith.mulf %62, %66 : vector<2x8xf32>
    %68 = vector.extract_strided_slice %56 {offsets = [0, 8], sizes = [2, 8], strides = [1, 1]} : vector<2x16xf32> to vector<2x8xf32>
    %cst_19 = arith.constant dense<0xFF800000> : vector<2xf32>
    %69 = vector.multi_reduction <maximumf>, %68, %cst_19 [1] : vector<2x8xf32> to vector<2xf32>
    %70 = vector.shape_cast %69 : vector<2xf32> to vector<2x1xf32>
    %71 = vector.broadcast %70 : vector<2x1xf32> to vector<2x8xf32>
    %72 = arith.subf %68, %71 : vector<2x8xf32>
    %73 = math.exp %72 : vector<2x8xf32>
    %cst_20 = arith.constant dense<0.000000e+00> : vector<2xf32>
    %74 = vector.multi_reduction <add>, %73, %cst_20 [1] : vector<2x8xf32> to vector<2xf32>
    %75 = vector.shape_cast %74 : vector<2xf32> to vector<2x1xf32>
    %76 = tpu.reciprocal %75 {approx = true} : vector<2x1xf32> -> vector<2x1xf32>
    %77 = vector.broadcast %76 : vector<2x1xf32> to vector<2x8xf32>
    %78 = arith.mulf %73, %77 : vector<2x8xf32>
    %79 = tpu.concatenate %67, %78 in 1 : vector<2x8xf32>, vector<2x8xf32> -> vector<2x16xf32>
    %80 = vector.shape_cast %79 : vector<2x16xf32> to vector<2x16x1xf32>
    %81 = vector.broadcast %80 : vector<2x16x1xf32> to vector<2x16x32xf32>
    %82 = arith.mulf %81, %14 : vector<2x16x32xf32>
    %cst_21 = arith.constant dense<0.000000e+00> : vector<2x32xf32>
    %83 = vector.multi_reduction <add>, %82, %cst_21 [1] : vector<2x16x32xf32> to vector<2x32xf32>
    %84 = vector.shape_cast %67 : vector<2x8xf32> to vector<2x8x1xf32>
    %85 = vector.extract_strided_slice %14 {offsets = [0, 0, 0], sizes = [2, 8, 32], strides = [1, 1, 1]} : vector<2x16x32xf32> to vector<2x8x32xf32>
    %86 = vector.broadcast %84 : vector<2x8x1xf32> to vector<2x8x32xf32>
    %87 = arith.mulf %86, %85 : vector<2x8x32xf32>
    %cst_22 = arith.constant dense<0.000000e+00> : vector<2x32xf32>
    %88 = vector.multi_reduction <add>, %87, %cst_22 [1] : vector<2x8x32xf32> to vector<2x32xf32>
    %89 = tpu.concatenate %83, %43, %2 in 1 : vector<2x32xf32>, vector<2x32xf32>, vector<2x32xf32> -> vector<2x96xf32>
    %cst_23 = arith.constant dense<0.000000e+00> : vector<2x128xf32>
    %90 = tpu.matmul %89, %7, %cst_23 {dimension_numbers = #tpu.dot_dimension_numbers<[1], [0], [0], [1], [0, 0, 1, 1], [], []>} : vector<2x96xf32>, vector<96x128xf32>, vector<2x128xf32> -> vector<2x128xf32>
    %91 = vector.broadcast %11 : vector<1x128xf32> to vector<2x128xf32>
    %92 = arith.addf %90, %91 : vector<2x128xf32>
    %93 = vector.extract_strided_slice %92 {offsets = [0, 0], sizes = [2, 32], strides = [1, 1]} : vector<2x128xf32> to vector<2x32xf32>
    %94 = arith.negf %93 : vector<2x32xf32>
    %95 = math.exp %94 : vector<2x32xf32>
    %cst_24 = arith.constant 1.000000e+00 : f32
    %96 = vector.broadcast %cst_24 : f32 to vector<2x32xf32>
    %97 = arith.addf %96, %95 : vector<2x32xf32>
    %98 = arith.divf %96, %97 : vector<2x32xf32>
    %99 = vector.extract_strided_slice %92 {offsets = [0, 32], sizes = [2, 32], strides = [1, 1]} : vector<2x128xf32> to vector<2x32xf32>
    %100 = arith.negf %99 : vector<2x32xf32>
    %101 = math.exp %100 : vector<2x32xf32>
    %cst_25 = arith.constant 1.000000e+00 : f32
    %102 = vector.broadcast %cst_25 : f32 to vector<2x32xf32>
    %103 = arith.addf %102, %101 : vector<2x32xf32>
    %104 = arith.divf %102, %103 : vector<2x32xf32>
    %105 = vector.extract_strided_slice %92 {offsets = [0, 64], sizes = [2, 32], strides = [1, 1]} : vector<2x128xf32> to vector<2x32xf32>
    %106 = math.tanh %105 : vector<2x32xf32>
    %107 = vector.extract_strided_slice %92 {offsets = [0, 96], sizes = [2, 32], strides = [1, 1]} : vector<2x128xf32> to vector<2x32xf32>
    %108 = arith.negf %107 : vector<2x32xf32>
    %109 = math.exp %108 : vector<2x32xf32>
    %cst_26 = arith.constant 1.000000e+00 : f32
    %110 = vector.broadcast %cst_26 : f32 to vector<2x32xf32>
    %111 = arith.addf %110, %109 : vector<2x32xf32>
    %112 = arith.divf %110, %111 : vector<2x32xf32>
    %113 = arith.mulf %104, %4 : vector<2x32xf32>
    %114 = arith.mulf %98, %106 : vector<2x32xf32>
    %115 = arith.addf %113, %114 : vector<2x32xf32>
    %116 = math.tanh %115 : vector<2x32xf32>
    %117 = arith.mulf %112, %116 : vector<2x32xf32>
    %cst_27 = arith.constant 0.000000e+00 : f32
    %118 = vector.broadcast %cst_27 : f32 to vector<2x88xf32>
    %119 = tpu.concatenate %43, %117, %41, %115, %88, %67, %118 in 1 : vector<2x32xf32>, vector<2x32xf32>, vector<2x32xf32>, vector<2x32xf32>, vector<2x32xf32>, vector<2x8xf32>, vector<2x88xf32> -> vector<2x256xf32>
    %c0_28 = arith.constant 0 : index
    %c0_29 = arith.constant 0 : index
    %120 = vector.load %arg4[%c0_28, %c0_29] : memref<2x256xf32, #tpu.memory_space<vmem>>, vector<2x256xf32>
    tpu.vector_store %arg4[%c0_28, %c0_29], %119 {strides = array<i32>} : memref<2x256xf32, #tpu.memory_space<vmem>>, vector<2x256xf32>,
    return
  }
}

</mosaic_0001>

<llo_original>
// kernel: top_down_decoder_core.1
$region0: #{top_down_decoder_core.1}
  #allocation0 [shape = 'u32[]', space=smem, size = 0x4, offset = 0x4, fixed_abs, tag = 'smem constant byte address 0x4 - core index']
  #allocation1 [shape = 'u32[144,128]{1,0:T(1,128)}', space=vmem, size = 0x12000, scoped, tag = 'internal scratch']
  %s0 = inlined_call_operand.vmem [shape: f32[2,208], index: 0, kind: input, shape index: {}]
  %s1 = inlined_call_operand.vmem [shape: f32[2,16,32], index: 1, kind: input, shape index: {}]
  %s2 = inlined_call_operand.vmem [shape: f32[2,16,32], index: 2, kind: input, shape index: {}]
  %s3 = inlined_call_operand.hbm [shape: f32[260,128], index: 3, kind: input, shape index: {}]
  %s4 = inlined_call_operand.vmem [shape: f32[2,256], index: 4, kind: output, shape index: {}]
  %s5 = sld [smem:[#allocation0]]
  $region30: #{top_down_decoder_core.1} parent=0
    _
  %s7 = ssub.s32 1, %s5
  %s8 = scalar_select 0, %s7, %s5
  $region1: #{top_down_decoder_core.1} parent=0
    #allocation2 [shape = 'u8[135168]{0}', space=vmem, size = 0x21000, scoped, tag = 'input window, operand 3, single buffered']
    #allocation3 [shape = 's32[1]{0}', space=sflag, size = 0x4, scoped, tag = 'scoped memory for top_down_decoder_core.1']
    %9 = vsyncpa [#allocation3], 0
    // Predicated region
    $region2: #{top_down_decoder_core.1} parent=1 // pred_check
      _
    $region3: #{top_down_decoder_core.1} parent=1 // pred_check_branch
      %11 = sbr.rel (0) target = $region5
    $region4: #{top_down_decoder_core.1} parent=1 // pred_region
      _
    $region5: #{top_down_decoder_core.1} parent=1 // pred_fallthru
      _
    // Predicated region
    $region6: #{top_down_decoder_core.1} parent=1 // pred_check
      _
    $region7: #{top_down_decoder_core.1} parent=1 // pred_check_branch
      %13 = sbr.rel (0) target = $region9
    $region8: #{top_down_decoder_core.1} parent=1 // pred_region
      _
    $region9: #{top_down_decoder_core.1} parent=1 // pred_fallthru
      _
    // Predicated region
    $region10: #{top_down_decoder_core.1} parent=1 // pred_check
      _
    $region11: #{top_down_decoder_core.1} parent=1 // pred_check_branch
      %15 = sbr.rel (0) target = $region13
    $region12: #{top_down_decoder_core.1} parent=1 // pred_region
      _
    $region13: #{top_down_decoder_core.1} parent=1 // pred_fallthru
      _
    // Predicated region
    $region14: #{top_down_decoder_core.1} parent=1 // pred_check
      _
    $region15: #{top_down_decoder_core.1} parent=1 // pred_check_branch
      %17 = sbr.rel (0) target = $region17
    $region16: #{top_down_decoder_core.1} parent=1 // pred_region
      %s19 = ssub.s32 4224, 4224
      %20 = vsyncadd [#allocation3], %s19
      %s21 = sshll.u32 [#allocation2], 4
      %s22 = int_to_ptr.vmem [resolvable:$true] %s21
      %27 = dma.hbm_to_vmem [thread:$0]  %s3, 4224, %s22, [#allocation3], 128, 128, 8
    $region17: #{top_down_decoder_core.1} parent=1 // pred_fallthru
      _
    // Predicated region
    $region18: #{top_down_decoder_core.1} parent=1 // pred_check
      _
    $region19: #{top_down_decoder_core.1} parent=1 // pred_check_branch
      %29 = sbr.rel (0) target = $region21
    $region20: #{top_down_decoder_core.1} parent=1 // pred_region
      %30 = dma.done [#allocation3], 4224
    $region21: #{top_down_decoder_core.1} parent=1 // pred_fallthru
      _
    %v31 = vld [vmem:[%s0] sm:$0xf]
    %v32 = vld [vmem:[#allocation2] sm:$0xff]
    %v33 = vld [vmem:[#allocation2 + $0x8] sm:$0xff]
    %v34 = vld [vmem:[#allocation2 + $0x10] sm:$0xff]
    %v35 = vld [vmem:[#allocation2 + $0x18] sm:$0xff]
    %v36 = vld [vmem:[#allocation2 + $0x20] sm:$0xff]
    %v37 = vld [vmem:[#allocation2 + $0x28] sm:$0xff]
    %v38 = vld [vmem:[#allocation2 + $0x30] sm:$0xff]
    %v39 = vld [vmem:[#allocation2 + $0x38] sm:$0xff]
    %v40 = vld [vmem:[#allocation2 + $0x40] sm:$0xff]
    %v41 = vld [vmem:[#allocation2 + $0x48] sm:$0xff]
    %v42 = vld [vmem:[#allocation2 + $0x50] sm:$0xff]
    %v43 = vld [vmem:[#allocation2 + $0x58] sm:$0xff]
    %v44 = vld [vmem:[#allocation2 + $0x60] sm:$0xff]
    %v45 = vld [vmem:[#allocation2 + $0x68] sm:$0xff]
    %v46 = vld [vmem:[#allocation2 + $0x70] sm:$0xff]
    %v47 = vld [vmem:[#allocation2 + $0x78] sm:$0xff]
    %v48 = vld [vmem:[#allocation2 + $0x80] sm:$0xff]
    %v49 = vld [vmem:[#allocation2 + $0x88] sm:$0xff]
    %v50 = vld [vmem:[#allocation2 + $0x90] sm:$0xff]
    %v51 = vld [vmem:[#allocation2 + $0x98] sm:$0xff]
    %v52 = vld [vmem:[#allocation2 + $0xa0] sm:$0xff]
    %v53 = vld [vmem:[#allocation2 + $0xa8] sm:$0xff]
    %v54 = vld [vmem:[#allocation2 + $0xb0] sm:$0xff]
    %v55 = vld [vmem:[#allocation2 + $0xb8] sm:$0xff]
    %v56 = vld [vmem:[#allocation2 + $0xc0] sm:$0xff]
    %v57 = vld [vmem:[#allocation2 + $0xc8] sm:$0xff]
    %v58 = vld [vmem:[#allocation2 + $0xd0] sm:$0xff]
    %v59 = vld [vmem:[#allocation2 + $0xd8] sm:$0xff]
    %v60 = vld [vmem:[#allocation2 + $0xe0] sm:$0xff]
    %v61 = vld [vmem:[#allocation2 + $0xe8] sm:$0xff]
    %v62 = vld [vmem:[#allocation2 + $0xf0] sm:$0xff]
    %v63 = vld [vmem:[#allocation2 + $0xf8] sm:$0xff]
    %v64 = vld [vmem:[#allocation2 + $0x100] sm:$0xf]
    %v65 = vld [vmem:[%s1] sm:$0xff]
    %v66 = vld [vmem:[%s1 + $0x8] sm:$0xff]
    %v67 = vld [vmem:[%s1 + $0x10] sm:$0xff]
    %v68 = vld [vmem:[%s1 + $0x18] sm:$0xff]
    %v69 = vld [vmem:[%s2] sm:$0xff]
    %v70 = vld [vmem:[%s2 + $0x8] sm:$0xff]
    %v71 = vld [vmem:[%s2 + $0x10] sm:$0xff]
    %v72 = vld [vmem:[%s2 + $0x18] sm:$0xff]
    %v73 = vlaneseq
    %v74 = vshrl.u32 %v73, 7
    %v75 = vsub.s32 0, %v74
    %v76 = vrot.slane %v64, %v75
    %77 = vmatprep.subr.mxu0 0.0
    %78 = vmatpush1.msra.mxu0 %v47
    %79 = vmatprep.subr.mxu0 0.0
    %80 = vmatpush1.msra.mxu0 %v46
    %81 = vmatprep.subr.mxu0 0.0
    %82 = vmatpush1.msra.mxu0 %v45
    %83 = vmatprep.subr.mxu0 0.0
    %84 = vmatpush1.msra.mxu0 %v44
    %85 = vmatprep.subr.mxu0 0.0
    %86 = vmatpush1.msra.mxu0 %v43
    %87 = vmatprep.subr.mxu0 0.0
    %88 = vmatpush1.msra.mxu0 %v42
    %89 = vmatprep.subr.mxu0 0.0
    %90 = vmatpush1.msra.mxu0 %v41
    %91 = vmatprep.subr.mxu0 0.0
    %92 = vmatpush1.msra.mxu0 %v40
    %93 = vmatprep.subr.mxu0 0.0
    %94 = vmatpush1.msra.mxu0 %v39
    %95 = vmatprep.subr.mxu0 0.0
    %96 = vmatpush1.msra.mxu0 %v38
    %97 = vmatprep.subr.mxu0 0.0
    %98 = vmatpush1.msra.mxu0 %v37
    %99 = vmatprep.subr.mxu0 0.0
    %100 = vmatpush1.msra.mxu0 %v36
    %101 = vmatprep.subr.mxu0 0.0
    %102 = vmatpush1.msra.mxu0 %v35
    %103 = vmatprep.subr.mxu0 0.0
    %104 = vmatpush1.msra.mxu0 %v34
    %105 = vmatprep.subr.mxu0 0.0
    %106 = vmatpush1.msra.mxu0 %v33
    %107 = vmatprep.subr.mxu0 0.0
    %108 = vmatpush1.msra.mxu0 %v32
    %109 = vmatprep.subr.mxu0 0.0
    %110 = vmatpush2.msra.mxu0 0.0
    %111 = vmatprep.subr.mxu0 0.0
    %112 = vmatpush2.msra.mxu0 0.0
    %113 = vmatprep.subr.mxu0 0.0
    %114 = vmatpush2.msra.mxu0 0.0
    %115 = vmatprep.subr.mxu0 0.0
    %116 = vmatpush2.msra.mxu0 0.0
    %117 = vmatprep.subr.mxu0 0.0
    %118 = vmatpush2.msra.mxu0 0.0
    %119 = vmatprep.subr.mxu0 0.0
    %120 = vmatpush2.msra.mxu0 0.0
    %121 = vmatprep.subr.mxu0 0.0
    %122 = vmatpush2.msra.mxu0 0.0
    %123 = vmatprep.subr.mxu0 0.0
    %124 = vmatpush2.msra.mxu0 0.0
    %125 = vmatprep.subr.mxu0 0.0
    %126 = vmatpush2.msra.mxu0 0.0
    %127 = vmatprep.subr.mxu0 0.0
    %128 = vmatpush2.msra.mxu0 0.0
    %129 = vmatprep.subr.mxu0 0.0
    %130 = vmatpush2.msra.mxu0 0.0
    %131 = vmatprep.subr.mxu0 0.0
    %132 = vmatpush2.msra.mxu0 0.0
    %133 = vmatprep.subr.mxu0 0.0
    %134 = vmatpush2.msra.mxu0 0.0
    %135 = vmatprep.subr.mxu0 0.0
    %136 = vmatpush2.msra.mxu0 0.0
    %137 = vmatprep.subr.mxu0 0.0
    %138 = vmatpush2.msra.mxu0 0.0
    %139 = vmatprep.subr.mxu0 0.0
    %140 = vmatpush2.msra.mxu0 0.0
    %141 = vmatprep.mubr.f32.mxu0 0.0
    %142 = vmatmul.mubr.f32.gmra.mxu0 %v31
    %v143 = vpop.f32.mrf.mxu0
    %v144 = vadd.f32 %v76, %v143
    %v145 = vpop.f32.mrf.mxu0
    %146 = vdwg.mxu0
    %v147 = vxor.u32 %v144, 2147483648
    %v148 = vmul.f32 %v147, 1.442695
    %v149 = vpow.pop %v148
    %v150 = vadd.f32 %v149, 1.0
    %v151 = vrcp.pop %v150
    %v152 = vmul.f32 1.0, %v151
    %v153 = vtanh.pop %v144
    %v156 = vunpack.c.l.s4 1983009808
    %v157 = vunpack.c.0.s8 %v156
    %v158 = vlaneseq
    %v159 = vshrl.u32 %v158, 7
    %v160 = vsub.s32 %v157, %v159
    %v161 = vrot.slane %v31, %v160
    %v162 = vcombine.high %v161, %v161
    %163 = vrot.lane.b32.xlu0 %v162, 32
    %v164 = vpop.permute.xlu0 %163
    %v166 = vmul.f32 %v152, %v164
    %168 = vrot.lane.b32.xlu0 %v153, 64
    %v169 = vpop.permute.xlu0 %168
    %v171 = vmul.f32 %v152, %v169
    %173 = vrot.lane.b32.xlu0 %v171, 32
    %v174 = vpop.permute.xlu0 %173
    %v176 = vadd.f32 %v166, %v174
    %v177 = vtanh.pop %v176
    %179 = vrot.lane.b32.xlu0 %v177, 64
    %v180 = vpop.permute.xlu0 %179
    %v182 = vmul.f32 %v152, %v180
    %v183 = vlaneseq
    %v184 = vshrl.u32 %v183, 7
    %v185 = vsub.s32 2, %v184
    %v186 = vrot.slane %v64, %v185
    %188 = vrot.lane.b32.xlu0 %v182, 32
    %v189 = vpop.permute.xlu0 %188
    %vm190 = vcmask 261120
    %v191 = vsel %vm190, %v189, 0
    %193 = vmatprep.subr.mxu0 0.0
    %194 = vmatpush1.msra.mxu0 0.0
    %195 = vmatprep.subr.mxu0 0.0
    %196 = vmatpush1.msra.mxu0 0.0
    %197 = vmatprep.subr.mxu0 0.0
    %198 = vmatpush1.msra.mxu0 0.0
    %199 = vmatprep.subr.mxu0 0.0
    %200 = vmatpush1.msra.mxu0 0.0
    %201 = vmatprep.subr.mxu0 0.0
    %202 = vmatpush1.msra.mxu0 0.0
    %203 = vmatprep.subr.mxu0 0.0
    %204 = vmatpush1.msra.mxu0 0.0
    %205 = vmatprep.subr.mxu0 0.0
    %206 = vmatpush1.msra.mxu0 0.0
    %207 = vmatprep.subr.mxu0 0.0
    %208 = vmatpush1.msra.mxu0 0.0
    %209 = vmatprep.subr.mxu0 0.0
    %210 = vmatpush1.msra.mxu0 0.0
    %211 = vmatprep.subr.mxu0 0.0
    %212 = vmatpush1.msra.mxu0 0.0
    %213 = vmatprep.subr.mxu0 0.0
    %214 = vmatpush1.msra.mxu0 0.0
    %215 = vmatprep.subr.mxu0 0.0
    %216 = vmatpush1.msra.mxu0 0.0
    %217 = vmatprep.subr.mxu0 0.0
    %218 = vmatpush1.msra.mxu0 %v63
    %219 = vmatprep.subr.mxu0 0.0
    %220 = vmatpush1.msra.mxu0 %v62
    %221 = vmatprep.subr.mxu0 0.0
    %222 = vmatpush1.msra.mxu0 %v61
    %223 = vmatprep.subr.mxu0 0.0
    %224 = vmatpush1.msra.mxu0 %v60
    %225 = vmatprep.subr.mxu0 0.0
    %226 = vmatpush2.msra.mxu0 0.0
    %227 = vmatprep.subr.mxu0 0.0
    %228 = vmatpush2.msra.mxu0 0.0
    %229 = vmatprep.subr.mxu0 0.0
    %230 = vmatpush2.msra.mxu0 0.0
    %231 = vmatprep.subr.mxu0 0.0
    %232 = vmatpush2.msra.mxu0 0.0
    %233 = vmatprep.subr.mxu0 0.0
    %234 = vmatpush2.msra.mxu0 0.0
    %235 = vmatprep.subr.mxu0 0.0
    %236 = vmatpush2.msra.mxu0 0.0
    %237 = vmatprep.subr.mxu0 0.0
    %238 = vmatpush2.msra.mxu0 0.0
    %239 = vmatprep.subr.mxu0 0.0
    %240 = vmatpush2.msra.mxu0 0.0
    %241 = vmatprep.subr.mxu0 0.0
    %242 = vmatpush2.msra.mxu0 0.0
    %243 = vmatprep.subr.mxu0 0.0
    %244 = vmatpush2.msra.mxu0 0.0
    %245 = vmatprep.subr.mxu0 0.0
    %246 = vmatpush2.msra.mxu0 0.0
    %247 = vmatprep.subr.mxu0 0.0
    %248 = vmatpush2.msra.mxu0 0.0
    %249 = vmatprep.subr.mxu0 0.0
    %250 = vmatpush2.msra.mxu0 0.0
    %251 = vmatprep.subr.mxu0 0.0
    %252 = vmatpush2.msra.mxu0 0.0
    %253 = vmatprep.subr.mxu0 0.0
    %254 = vmatpush2.msra.mxu0 0.0
    %255 = vmatprep.subr.mxu0 0.0
    %256 = vmatpush2.msra.mxu0 0.0
    %257 = vmatprep.mubr.f32.mxu0 0.0
    %258 = vmatmul.mubr.f32.gmra.mxu0 %v191
    %v259 = vpop.f32.mrf.mxu0
    %v260 = vadd.f32 %v186, %v259
    %v261 = vpop.f32.mrf.mxu0
    %262 = vdwg.mxu0
    %v265 = vunpack.c.l.s4 1966171168
    %v266 = vunpack.c.0.s8 %v265
    %v267 = vlaneseq
    %v268 = vshrl.u32 %v267, 7
    %v269 = vsub.s32 %v266, %v268
    %v270 = vrot.slane %v260, %v269
    %v271 = vcombine.high %v270, %v270
    %v273 = vunpack.c.l.s4 1966171168
    %v274 = vunpack.c.0.s8 %v273
    %v275 = vlaneseq
    %v276 = vshrl.u32 %v275, 7
    %v277 = vsub.s32 %v274, %v276
    %v278 = vrot.slane %v270, %v277
    %v280 = vunpack.c.l.s4 1966171168
    %v281 = vunpack.c.0.s8 %v280
    %v282 = vlaneseq
    %v283 = vshrl.u32 %v282, 7
    %v284 = vsub.s32 %v281, %v283
    %v285 = vrot.slane %v271, %v284
    %v286 = vlaneseq
    %v287 = vshrl.u32 %v286, 7
    %v288 = vsub.s32 0, %v287
    %v289 = vrot.slane %v278, %v288
    %v290 = vlaneseq
    %v291 = vshrl.u32 %v290, 7
    %v292 = vsub.s32 0, %v291
    %v293 = vrot.slane %v285, %v292
    %v296 = vadd.f32 %v69, %v289
    %v297 = vadd.f32 %v70, %v289
    %v298 = vadd.f32 %v71, %v293
    %v299 = vadd.f32 %v72, %v293
    %v300 = vtanh.pop %v296
    %v301 = vtanh.pop %v297
    %v302 = vtanh.pop %v298
    %v303 = vtanh.pop %v299
    %v304 = vlaneseq
    %v305 = vshrl.u32 %v304, 7
    %v306 = vsub.s32 3, %v305
    %v307 = vrot.slane %v64, %v306
    %v308 = vmul.f32 %v300, %v307
    %v309 = vmul.f32 %v301, %v307
    %v310 = vmul.f32 %v302, %v307
    %v311 = vmul.f32 %v303, %v307
    %v312 = vsel %vm190, %v308, 0.0
    %313 = vadd.xlane.f32.xlu0 %v312
    %v314 = vpop.xlane.xlu0 %313
    %v315 = vsel %vm190, %v309, 0.0
    %316 = vadd.xlane.f32.xlu0 %v315
    %v317 = vpop.xlane.xlu0 %316
    %v318 = vsel %vm190, %v310, 0.0
    %319 = vadd.xlane.f32.xlu0 %v318
    %v320 = vpop.xlane.xlu0 %319
    %v321 = vsel %vm190, %v311, 0.0
    %322 = vadd.xlane.f32.xlu0 %v321
    %v323 = vpop.xlane.xlu0 %322
    %v324 = vlaneseq
    %v325 = vshrl.u32 %v324, 7
    %v326 = vsub.s32 0, %v325
    %v327 = vrot.slane %v162, %v326
    %s329 = sor.u32 256, 64
    %330 = vbcast.lane.b32.xlu0 %v327, %s329
    %v331 = vpop.permute.xlu0 %330
    %s333 = sor.u32 256, 72
    %334 = vbcast.lane.b32.xlu0 %v327, %s333
    %v335 = vpop.permute.xlu0 %334
    %v336 = vlaneseq
    %v337 = vshrl.u32 %v336, 7
    %v338 = vsub.s32 1, %v337
    %v339 = vrot.slane %v162, %v338
    %s341 = sor.u32 256, 64
    %342 = vbcast.lane.b32.xlu0 %v339, %s341
    %v343 = vpop.permute.xlu0 %342
    %s345 = sor.u32 256, 72
    %346 = vbcast.lane.b32.xlu0 %v339, %s345
    %v347 = vpop.permute.xlu0 %346
    %v352 = vadd.f32 %v314, %v331
    %v353 = vadd.f32 %v317, %v335
    %v354 = vadd.f32 %v320, %v343
    %v355 = vadd.f32 %v323, %v347
    %358 = vset.pattern.permute.xlu0 0
    %359 = vperm.xlu0 %358, %v352
    %v360 = vpop.permute.xlu0 %359
    %361 = vset.pattern.permute.xlu0 0
    %362 = vperm.xlu0 %361, %v354
    %v363 = vpop.permute.xlu0 %362
    %v364 = vlaneseq
    %v365 = vand.u32 %v364, 127
    %v366 = vlaneseq
    %v367 = vshrl.u32 %v366, 7
    %v368 = vsub.s32 %v365, %v367
    %v369 = vrot.slane %v360, %v368
    %v370 = vlaneseq
    %v371 = vshrl.u32 %v370, 7
    %v372 = vsub.s32 %v365, %v371
    %v373 = vrot.slane %v363, %v372
    %vm374 = vcmask 1041409
    %v375 = vsel %vm374, %v373, %v369
    %vm377 = vcmask 58368
    %v378 = vsel %vm377, %v375, -inf
    %379 = vmax.xlane.f32.xlu0 %v378
    %v380 = vpop.xlane.xlu0 %379
    %v382 = vlaneseq
    %v383 = vshrl.u32 %v382, 7
    %v384 = vsub.s32 0, %v383
    %v385 = vrot.slane %v380, %v384
    %v386 = vlaneseq
    %v387 = vshrl.u32 %v386, 7
    %v388 = vsub.s32 1, %v387
    %v389 = vrot.slane %v380, %v388
    %v392 = vsub.f32 %v352, %v385
    %v393 = vsub.f32 %v354, %v389
    %v394 = vmul.f32 %v392, 1.442695
    %v395 = vpow.pop %v394
    %v396 = vmul.f32 %v393, 1.442695
    %v397 = vpow.pop %v396
    %400 = vset.pattern.permute.xlu0 0
    %401 = vperm.xlu0 %400, %v395
    %v402 = vpop.permute.xlu0 %401
    %403 = vset.pattern.permute.xlu0 0
    %404 = vperm.xlu0 %403, %v397
    %v405 = vpop.permute.xlu0 %404
    %v406 = vlaneseq
    %v407 = vshrl.u32 %v406, 7
    %v408 = vsub.s32 %v365, %v407
    %v409 = vrot.slane %v402, %v408
    %v410 = vlaneseq
    %v411 = vshrl.u32 %v410, 7
    %v412 = vsub.s32 %v365, %v411
    %v413 = vrot.slane %v405, %v412
    %v414 = vsel %vm374, %v413, %v409
    %v416 = vsel %vm377, %v414, 0.0
    %417 = vadd.xlane.f32.xlu0 %v416
    %v418 = vpop.xlane.xlu0 %417
    %v419 = vrcp.pop %v418
    %v421 = vlaneseq
    %v422 = vshrl.u32 %v421, 7
    %v423 = vsub.s32 0, %v422
    %v424 = vrot.slane %v419, %v423
    %v425 = vlaneseq
    %v426 = vshrl.u32 %v425, 7
    %v427 = vsub.s32 1, %v426
    %v428 = vrot.slane %v419, %v427
    %v431 = vmul.f32 %v395, %v424
    %v432 = vmul.f32 %v397, %v428
    %435 = vset.pattern.permute.xlu0 0
    %436 = vperm.xlu0 %435, %v353
    %v437 = vpop.permute.xlu0 %436
    %438 = vset.pattern.permute.xlu0 0
    %439 = vperm.xlu0 %438, %v355
    %v440 = vpop.permute.xlu0 %439
    %v441 = vlaneseq
    %v442 = vshrl.u32 %v441, 7
    %v443 = vsub.s32 %v365, %v442
    %v444 = vrot.slane %v437, %v443
    %v445 = vlaneseq
    %v446 = vshrl.u32 %v445, 7
    %v447 = vsub.s32 %v365, %v446
    %v448 = vrot.slane %v440, %v447
    %v449 = vsel %vm374, %v448, %v444
    %v451 = vsel %vm377, %v449, -inf
    %452 = vmax.xlane.f32.xlu0 %v451
    %v453 = vpop.xlane.xlu0 %452
    %v455 = vlaneseq
    %v456 = vshrl.u32 %v455, 7
    %v457 = vsub.s32 0, %v456
    %v458 = vrot.slane %v453, %v457
    %v459 = vlaneseq
    %v460 = vshrl.u32 %v459, 7
    %v461 = vsub.s32 1, %v460
    %v462 = vrot.slane %v453, %v461
    %v465 = vsub.f32 %v353, %v458
    %v466 = vsub.f32 %v355, %v462
    %v467 = vmul.f32 %v465, 1.442695
    %v468 = vpow.pop %v467
    %v469 = vmul.f32 %v466, 1.442695
    %v470 = vpow.pop %v469
    %473 = vset.pattern.permute.xlu0 0
    %474 = vperm.xlu0 %473, %v468
    %v475 = vpop.permute.xlu0 %474
    %476 = vset.pattern.permute.xlu0 0
    %477 = vperm.xlu0 %476, %v470
    %v478 = vpop.permute.xlu0 %477
    %v479 = vlaneseq
    %v480 = vshrl.u32 %v479, 7
    %v481 = vsub.s32 %v365, %v480
    %v482 = vrot.slane %v475, %v481
    %v483 = vlaneseq
    %v484 = vshrl.u32 %v483, 7
    %v485 = vsub.s32 %v365, %v484
    %v486 = vrot.slane %v478, %v485
    %v487 = vsel %vm374, %v486, %v482
    %v489 = vsel %vm377, %v487, 0.0
    %490 = vadd.xlane.f32.xlu0 %v489
    %v491 = vpop.xlane.xlu0 %490
    %v492 = vrcp.pop %v491
    %v494 = vlaneseq
    %v495 = vshrl.u32 %v494, 7
    %v496 = vsub.s32 0, %v495
    %v497 = vrot.slane %v492, %v496
    %v498 = vlaneseq
    %v499 = vshrl.u32 %v498, 7
    %v500 = vsub.s32 1, %v499
    %v501 = vrot.slane %v492, %v500
    %v504 = vmul.f32 %v468, %v497
    %v505 = vmul.f32 %v470, %v501
    %508 = vset.pattern.permute.xlu0 0
    %509 = vperm.xlu0 %508, %v431
    %v510 = vpop.permute.xlu0 %509
    %511 = vset.pattern.permute.xlu0 0
    %512 = vperm.xlu0 %511, %v432
    %v513 = vpop.permute.xlu0 %512
    %v514 = vlaneseq
    %v515 = vshrl.u32 %v514, 7
    %v516 = vsub.s32 %v365, %v515
    %v517 = vrot.slane %v510, %v516
    %v518 = vlaneseq
    %v519 = vshrl.u32 %v518, 7
    %v520 = vsub.s32 %v365, %v519
    %v521 = vrot.slane %v513, %v520
    %v522 = vsel %vm374, %v521, %v517
    %526 = vset.pattern.permute.xlu0 0
    %527 = vperm.xlu0 %526, %v504
    %v528 = vpop.permute.xlu0 %527
    %529 = vset.pattern.permute.xlu0 0
    %530 = vperm.xlu0 %529, %v505
    %v531 = vpop.permute.xlu0 %530
    %v532 = vadd.s32 %v365, 4294967288
    %v533 = vlaneseq
    %v534 = vshrl.u32 %v533, 7
    %v535 = vsub.s32 %v532, %v534
    %v536 = vrot.slane %v528, %v535
    %v537 = vlaneseq
    %v538 = vshrl.u32 %v537, 7
    %v539 = vsub.s32 %v532, %v538
    %v540 = vrot.slane %v531, %v539
    %v541 = vsel %vm374, %v540, %v536
    %vm543 = vcmask 64512
    %v544 = vsel %vm543, %v522, %v541
    %v545 = vlaneseq
    %v546 = vshrl.u32 %v545, 7
    %v547 = vsub.s32 0, %v546
    %v548 = vrot.slane %v544, %v547
    %550 = vbcast.lane.b32.xlu0 %v548, 256
    %v551 = vpop.permute.xlu0 %550
    %s553 = sor.u32 256, 8
    %554 = vbcast.lane.b32.xlu0 %v548, %s553
    %v555 = vpop.permute.xlu0 %554
    %v556 = vlaneseq
    %v557 = vshrl.u32 %v556, 7
    %v558 = vsub.s32 1, %v557
    %v559 = vrot.slane %v544, %v558
    %561 = vbcast.lane.b32.xlu0 %v559, 256
    %v562 = vpop.permute.xlu0 %561
    %s564 = sor.u32 256, 8
    %565 = vbcast.lane.b32.xlu0 %v559, %s564
    %v566 = vpop.permute.xlu0 %565
    %v567 = vmul.f32 %v551, %v65
    %v568 = vmul.f32 %v555, %v66
    %v569 = vmul.f32 %v562, %v67
    %v570 = vmul.f32 %v566, %v68
    %v571 = vsel %vm190, %v567, 0.0
    %v572 = vsel %vm190, %v568, 0.0
    %v573 = vadd.f32 %v571, %v572
    %v574 = vrot.slane %v573, 4
    %v575 = vadd.f32 %v573, %v574
    %v576 = vrot.slane %v575, 2
    %v577 = vadd.f32 %v575, %v576
    %v578 = vrot.slane %v577, 1
    %v579 = vadd.f32 %v577, %v578
    %v580 = vsel %vm190, %v569, 0.0
    %v581 = vsel %vm190, %v570, 0.0
    %v582 = vadd.f32 %v580, %v581
    %v583 = vrot.slane %v582, 4
    %v584 = vadd.f32 %v582, %v583
    %v585 = vrot.slane %v584, 2
    %v586 = vadd.f32 %v584, %v585
    %v587 = vrot.slane %v586, 1
    %v588 = vadd.f32 %v586, %v587
    %v591 = vmul.f32 %v510, %v65
    %v592 = vmul.f32 %v513, %v67
    %v593 = vsel %vm190, %v591, 0.0
    %v594 = vrot.slane %v593, 4
    %v595 = vadd.f32 %v593, %v594
    %v596 = vrot.slane %v595, 2
    %v597 = vadd.f32 %v595, %v596
    %v598 = vrot.slane %v597, 1
    %v599 = vadd.f32 %v597, %v598
    %v600 = vsel %vm190, %v592, 0.0
    %v601 = vrot.slane %v600, 4
    %v602 = vadd.f32 %v600, %v601
    %v603 = vrot.slane %v602, 2
    %v604 = vadd.f32 %v602, %v603
    %v605 = vrot.slane %v604, 1
    %v606 = vadd.f32 %v604, %v605
    %v609 = vsel %vm374, %v588, %v579
    %611 = vrot.lane.b32.xlu0 %v182, 64
    %v612 = vpop.permute.xlu0 %611
    %614 = vrot.lane.b32.xlu0 %v161, 64
    %v615 = vpop.permute.xlu0 %614
    %v617 = vsel %vm190, %v609, %v612
    %vm618 = vcmask 523264
    %v619 = vsel %vm618, %v617, %v615
    %v620 = vlaneseq
    %v621 = vshrl.u32 %v620, 7
    %v622 = vsub.s32 1, %v621
    %v623 = vrot.slane %v64, %v622
    %vm624 = vcmask 785408
    %v626 = vsel %vm624, %v619, 0
    %628 = vmatprep.subr.mxu0 0.0
    %629 = vmatpush1.msra.mxu0 0.0
    %630 = vmatprep.subr.mxu0 0.0
    %631 = vmatpush1.msra.mxu0 0.0
    %632 = vmatprep.subr.mxu0 0.0
    %633 = vmatpush1.msra.mxu0 0.0
    %634 = vmatprep.subr.mxu0 0.0
    %635 = vmatpush1.msra.mxu0 0.0
    %636 = vmatprep.subr.mxu0 0.0
    %637 = vmatpush1.msra.mxu0 %v59
    %638 = vmatprep.subr.mxu0 0.0
    %639 = vmatpush1.msra.mxu0 %v58
    %640 = vmatprep.subr.mxu0 0.0
    %641 = vmatpush1.msra.mxu0 %v57
    %642 = vmatprep.subr.mxu0 0.0
    %643 = vmatpush1.msra.mxu0 %v56
    %644 = vmatprep.subr.mxu0 0.0
    %645 = vmatpush1.msra.mxu0 %v55
    %646 = vmatprep.subr.mxu0 0.0
    %647 = vmatpush1.msra.mxu0 %v54
    %648 = vmatprep.subr.mxu0 0.0
    %649 = vmatpush1.msra.mxu0 %v53
    %650 = vmatprep.subr.mxu0 0.0
    %651 = vmatpush1.msra.mxu0 %v52
    %652 = vmatprep.subr.mxu0 0.0
    %653 = vmatpush1.msra.mxu0 %v51
    %654 = vmatprep.subr.mxu0 0.0
    %655 = vmatpush1.msra.mxu0 %v50
    %656 = vmatprep.subr.mxu0 0.0
    %657 = vmatpush1.msra.mxu0 %v49
    %658 = vmatprep.subr.mxu0 0.0
    %659 = vmatpush1.msra.mxu0 %v48
    %660 = vmatprep.subr.mxu0 0.0
    %661 = vmatpush2.msra.mxu0 0.0
    %662 = vmatprep.subr.mxu0 0.0
    %663 = vmatpush2.msra.mxu0 0.0
    %664 = vmatprep.subr.mxu0 0.0
    %665 = vmatpush2.msra.mxu0 0.0
    %666 = vmatprep.subr.mxu0 0.0
    %667 = vmatpush2.msra.mxu0 0.0
    %668 = vmatprep.subr.mxu0 0.0
    %669 = vmatpush2.msra.mxu0 0.0
    %670 = vmatprep.subr.mxu0 0.0
    %671 = vmatpush2.msra.mxu0 0.0
    %672 = vmatprep.subr.mxu0 0.0
    %673 = vmatpush2.msra.mxu0 0.0
    %674 = vmatprep.subr.mxu0 0.0
    %675 = vmatpush2.msra.mxu0 0.0
    %676 = vmatprep.subr.mxu0 0.0
    %677 = vmatpush2.msra.mxu0 0.0
    %678 = vmatprep.subr.mxu0 0.0
    %679 = vmatpush2.msra.mxu0 0.0
    %680 = vmatprep.subr.mxu0 0.0
    %681 = vmatpush2.msra.mxu0 0.0
    %682 = vmatprep.subr.mxu0 0.0
    %683 = vmatpush2.msra.mxu0 0.0
    %684 = vmatprep.subr.mxu0 0.0
    %685 = vmatpush2.msra.mxu0 0.0
    %686 = vmatprep.subr.mxu0 0.0
    %687 = vmatpush2.msra.mxu0 0.0
    %688 = vmatprep.subr.mxu0 0.0
    %689 = vmatpush2.msra.mxu0 0.0
    %690 = vmatprep.subr.mxu0 0.0
    %691 = vmatpush2.msra.mxu0 0.0
    %692 = vmatprep.mubr.f32.mxu0 0.0
    %693 = vmatmul.mubr.f32.gmra.mxu0 %v626
    %v694 = vpop.f32.mrf.mxu0
    %v695 = vadd.f32 %v623, %v694
    %v696 = vpop.f32.mrf.mxu0
    %697 = vdwg.mxu0
    %v698 = vxor.u32 %v695, 2147483648
    %v699 = vmul.f32 %v698, 1.442695
    %v700 = vpow.pop %v699
    %v701 = vadd.f32 %v700, 1.0
    %v702 = vrcp.pop %v701
    %v703 = vmul.f32 1.0, %v702
    %v704 = vtanh.pop %v695
    %v706 = vmul.f32 %v703, %v162
    %708 = vrot.lane.b32.xlu0 %v704, 64
    %v709 = vpop.permute.xlu0 %708
    %v711 = vmul.f32 %v703, %v709
    %713 = vrot.lane.b32.xlu0 %v711, 32
    %v714 = vpop.permute.xlu0 %713
    %v716 = vadd.f32 %v706, %v714
    %v717 = vtanh.pop %v716
    %719 = vrot.lane.b32.xlu0 %v717, 64
    %v720 = vpop.permute.xlu0 %719
    %v722 = vmul.f32 %v703, %v720
    %725 = vrot.lane.b32.xlu0 %v722, 64
    %v726 = vpop.permute.xlu0 %725
    %729 = vrot.lane.b32.xlu0 %v176, 32
    %v730 = vpop.permute.xlu0 %729
    %733 = vrot.lane.b32.xlu0 %v716, 64
    %v734 = vpop.permute.xlu0 %733
    %v738 = vsel %vm374, %v606, %v599
    %v740 = vadd.s32 %v365, 4294967264
    %v741 = vlaneseq
    %v742 = vshrl.u32 %v741, 7
    %v743 = vsub.s32 %v740, %v742
    %v744 = vrot.slane %v510, %v743
    %v745 = vlaneseq
    %v746 = vshrl.u32 %v745, 7
    %v747 = vsub.s32 %v740, %v746
    %v748 = vrot.slane %v513, %v747
    %v749 = vsel %vm374, %v748, %v744
    %v751 = vsel %vm190, %v189, %v726
    %v752 = vsel %vm618, %v751, %v730
    %v753 = vsel %vm624, %v752, %v734
    %v754 = vsel %vm190, %v738, %v749
    %vm755 = vcmask 326656
    %v756 = vsel %vm755, %v754, 0.0
    %v759 = vcombine.low %v753, %v756
    %v761 = vunpack.c.l.s4 1983009808
    %v762 = vunpack.c.0.s8 %v761
    %v763 = vlaneseq
    %v764 = vshrl.u32 %v763, 7
    %v765 = vsub.s32 %v762, %v764
    %v766 = vrot.slane %v759, %v765
    %768 = vst [vmem:[%s4] sm:$0xf] %v766
    // Predicated region
    $region22: #{top_down_decoder_core.1} parent=1 // pred_check
      _
    $region23: #{top_down_decoder_core.1} parent=1 // pred_check_branch
      %770 = sbr.rel (0) target = $region25
    $region24: #{top_down_decoder_core.1} parent=1 // pred_region
      _
    $region25: #{top_down_decoder_core.1} parent=1 // pred_fallthru
      _
    // Predicated region
    $region26: #{top_down_decoder_core.1} parent=1 // pred_check
      _
    $region27: #{top_down_decoder_core.1} parent=1 // pred_check_branch
      %772 = sbr.rel (0) target = $region29
    $region28: #{top_down_decoder_core.1} parent=1 // pred_region
      _
    $region29: #{top_down_decoder_core.1} parent=1 // pred_fallthru
      _
    %773 = vsyncpa [#allocation3], 1

</llo_original>
